<compile_context>
chip_gen: v7x
topology: tpu7x:2x2x1
jax: 0.10.0
libtpu: 0.0.40
codegen_flags: <defaults>
</compile_context>

<pallas_src>
import math
from functools import partial

import jax
import jax.numpy as jnp
from jax.experimental import pallas as pl
from jax.experimental.pallas import tpu as pltpu

LANE = 128
NUM_SPLITS = 2                    # leading "parallel" grid axis (v7x: 2 TCs)
BLOCK_ROWS_2IN = 4096             # 2 MiB/block/input (x2 inputs x2 buffers = 8 MiB)
BLOCK_ROWS_1IN = 8192             # 4 MiB/block       (x2 buffers           = 8 MiB)
VMEM_LIMIT_BYTES = 32 * 1024 * 1024
Z_JNP_MAX_ELEMS = 1 << 18         # below ~1 MiB f32, sum(log(z)) stays in XLA


def _prep(x, pad_value):
    """Flatten to (rows, 128).

    Free (pure reshape) when x.size % 128 == 0 (the usual NCHW case).  Otherwise
    pad with a NEUTRAL constant (1.0 for log() inputs, 0.0 otherwise) so the
    padded lanes contribute exactly zero and no in-kernel masking is needed.
    """
    flat = x.reshape(-1)
    pad = (-flat.shape[0]) % LANE
    if pad:
        # TODO(synk): this full-copy pad only triggers for lane-unaligned sizes;
        # a prefix+jnp-tail split would avoid the extra HBM round trip.
        flat = jnp.pad(flat, (0, pad), constant_values=pad_value)
    return flat.reshape(-1, LANE)


def _plan(rows, max_block_rows):
    """Pick (nsplits, steps, block_rows, rem_rows).

    The 2-D grid (nsplits, steps) covers `rows` exactly, except possibly a
    single partial LAST block that holds rem_rows (< block_rows) valid rows.
    No grid block is ever fully out of bounds.
    """
    if rows <= max_block_rows:
        return 1, 1, rows, rows                      # one block == full array
    block_rows = max_block_rows                      # multiple of 8
    n_blocks = pl.cdiv(rows, block_rows)
    rem_rows = rows - (n_blocks - 1) * block_rows
    if n_blocks % NUM_SPLITS == 0:
        return NUM_SPLITS, n_blocks // NUM_SPLITS, block_rows, rem_rows
    # TODO(synk): odd block counts fall back to a single TensorCore split.
    return 1, n_blocks, block_rows, rem_rows


# ----------------------------------------------------------------------------
# Kernels: stream (block_rows, 128) f32 slabs into lane-parallel (1, 1, 128)
# accumulators (one per split).  Row masking happens ONLY in the single
# partial last block, via a static-threshold sublane-iota compare.
# ----------------------------------------------------------------------------
def _row_mask(block_rows, rem_rows):
    row = jax.lax.broadcasted_iota(jnp.int32, (block_rows, LANE), 0)
    return row < rem_rows


def _masked_logsum_kernel(y_ref, m_ref, logsum_ref, masksum_ref, *,
                          block_rows, rem_rows, last_c, last_i):
    """Accumulates sum(log(y) * m) and sum(m)."""
    i = pl.program_id(1)

    @pl.when(i == 0)
    def _():
        logsum_ref[...] = jnp.zeros_like(logsum_ref)
        masksum_ref[...] = jnp.zeros_like(masksum_ref)

    y = y_ref[...].astype(jnp.float32)
    m = m_ref[...].astype(jnp.float32)

    def accum(term, msum):
        logsum_ref[...] += jnp.sum(term, axis=0, keepdims=True)[None]
        masksum_ref[...] += jnp.sum(msum, axis=0, keepdims=True)[None]

    if rem_rows == block_rows:                       # exact tiling: no mask
        accum(jnp.log(y) * m, m)
    else:
        is_last = jnp.logical_and(pl.program_id(0) == last_c, i == last_i)

        @pl.when(jnp.logical_not(is_last))
        def _():
            accum(jnp.log(y) * m, m)

        @pl.when(is_last)
        def _():
            valid = _row_mask(block_rows, rem_rows)
            accum(jnp.where(valid, jnp.log(y) * m, 0.0),
                  jnp.where(valid, m, 0.0))


def _logsum_kernel(y_ref, logsum_ref, *, block_rows, rem_rows, last_c, last_i):
    """Accumulates sum(log(y))."""
    i = pl.program_id(1)

    @pl.when(i == 0)
    def _():
        logsum_ref[...] = jnp.zeros_like(logsum_ref)

    y = y_ref[...].astype(jnp.float32)

    def accum(term):
        logsum_ref[...] += jnp.sum(term, axis=0, keepdims=True)[None]

    if rem_rows == block_rows:
        accum(jnp.log(y))
    else:
        is_last = jnp.logical_and(pl.program_id(0) == last_c, i == last_i)

        @pl.when(jnp.logical_not(is_last))
        def _():
            accum(jnp.log(y))

        @pl.when(is_last)
        def _():
            accum(jnp.where(_row_mask(block_rows, rem_rows), jnp.log(y), 0.0))


def _sse_kernel(a_ref, b_ref, sse_ref, *, block_rows, rem_rows, last_c, last_i):
    """Accumulates sum((a - b)^2)."""
    i = pl.program_id(1)

    @pl.when(i == 0)
    def _():
        sse_ref[...] = jnp.zeros_like(sse_ref)

    d = a_ref[...].astype(jnp.float32) - b_ref[...].astype(jnp.float32)

    def accum(term):
        sse_ref[...] += jnp.sum(term, axis=0, keepdims=True)[None]

    if rem_rows == block_rows:
        accum(d * d)
    else:
        is_last = jnp.logical_and(pl.program_id(0) == last_c, i == last_i)

        @pl.when(jnp.logical_not(is_last))
        def _():
            accum(d * d)

        @pl.when(is_last)
        def _():
            accum(jnp.where(_row_mask(block_rows, rem_rows), d * d, 0.0))


# ----------------------------------------------------------------------------
# pallas_call wrappers
# ----------------------------------------------------------------------------
def _build_call(kernel, n_inputs, n_outputs, rows, max_block_rows, itemsize,
                flops_per_elem, trans_per_elem):
    nsplits, steps, block_rows, rem_rows = _plan(rows, max_block_rows)
    kern = partial(kernel, block_rows=block_rows, rem_rows=rem_rows,
                   last_c=nsplits - 1, last_i=steps - 1)
    in_spec = pl.BlockSpec((block_rows, LANE), lambda c, i: (c * steps + i, 0))
    acc_spec = pl.BlockSpec((1, 1, LANE), lambda c, i: (c, 0, 0))
    acc_shape = jax.ShapeDtypeStruct((nsplits, 1, LANE), jnp.float32)
    n_elems = rows * LANE
    out_shape = tuple([acc_shape] * n_outputs)
    out_specs = tuple([acc_spec] * n_outputs)
    if n_outputs == 1:
        out_shape, out_specs = out_shape[0], out_specs[0]
    return pl.pallas_call(
        kern,
        out_shape=out_shape,
        grid_spec=pltpu.PrefetchScalarGridSpec(
            num_scalar_prefetch=0,
            grid=(nsplits, steps),
            in_specs=[in_spec] * n_inputs,
            out_specs=out_specs,
        ),
        compiler_params=pltpu.CompilerParams(
            dimension_semantics=("parallel", "arbitrary"),
            vmem_limit_bytes=VMEM_LIMIT_BYTES),
        cost_estimate=pl.CostEstimate(
            flops=flops_per_elem * n_elems,
            transcendentals=trans_per_elem * n_elems,
            bytes_accessed=n_inputs * n_elems * itemsize
            + n_outputs * nsplits * LANE * 4),
    )


def masked_log_sums(y, mask, *, max_block_rows=BLOCK_ROWS_2IN):
    """Returns (sum(log(y) * mask), sum(mask)) in one fused streaming pass."""
    yt = _prep(y, 1.0)            # log(1) * 0 == 0 for padded lanes
    mt = _prep(mask, 0.0)
    call = _build_call(_masked_logsum_kernel, 2, 2, yt.shape[0],
                       max_block_rows, yt.dtype.itemsize, 4, 1)
    logsum, masksum = call(yt, mt)
    return jnp.sum(logsum), jnp.sum(masksum)


def _log_sum_pallas(y, *, max_block_rows=BLOCK_ROWS_1IN):
    yt = _prep(y, 1.0)            # log(1) == 0 for padded lanes
    call = _build_call(_logsum_kernel, 1, 1, yt.shape[0],
                       max_block_rows, yt.dtype.itemsize, 1, 1)
    return jnp.sum(call(yt))


def log_sum(y, *, max_block_rows=BLOCK_ROWS_1IN):
    """sum(log(y)).  Tiny tensors (typical hyper-latent z) stay in plain XLA:
    the pallas_call dispatch + pipeline ramp dwarfs the streaming time."""
    if y.size < Z_JNP_MAX_ELEMS:
        return jnp.sum(jnp.log(y.astype(jnp.float32)))
    return _log_sum_pallas(y, max_block_rows=max_block_rows)


def sum_squared_error(a, b, *, max_block_rows=BLOCK_ROWS_2IN):
    """Returns sum((a - b)^2)."""
    at = _prep(a, 0.0)            # zero-padding -> d == 0, no masking needed
    bt = _prep(b, 0.0)
    call = _build_call(_sse_kernel, 2, 1, at.shape[0],
                       max_block_rows, at.dtype.itemsize, 3, 0)
    return jnp.sum(call(at, bt))


# ----------------------------------------------------------------------------
# RateDistortionLossProj forward (metric='mse', return_type='all')
# ----------------------------------------------------------------------------
@jax.jit
def rate_distortion_loss_proj(output, target, lmbda=0.01):
    n, _, h, w = target.shape
    num_pixels = n * h * w

    y_lik = output["likelihoods"]["y"]
    z_lik = output["likelihoods"]["z"]
    y_mask = output["y_mask"]
    x_hat = output["x_hat"]

    # sum(log(y) * y_mask) and sum(y_mask) fused into one Pallas pass.
    sum_logy_mask, sum_mask = masked_log_sums(y_lik, y_mask)
    # sum(log(z)): plain XLA reduce for small z, Pallas kernel otherwise.
    sum_logz = log_sum(z_lik)

    out = {}
    out["bpp_loss"] = (sum_logy_mask + sum_logz) / (-math.log(2) * num_pixels)
    out["mask_ave"] = sum_mask / float(y_mask.size)
    out["entropy_y_ave"] = sum_logy_mask / sum_mask

    # pr_src / pr_dst treated as identity (see TODO at top of file)
    ps = x_hat
    pt = target

    # PMSE(size_average=True, mask=None): mean squared error over all elements
    sse = sum_squared_error(ps, pt)
    out["mse_loss"] = sse / float(ps.size)

    distortion = (255.0 ** 2) * out["mse_loss"]
    out["loss"] = lmbda * distortion + out["bpp_loss"]
    return out


# ----------------------------------------------------------------------------
if __name__ == "__main__":
    key = jax.random.PRNGKey(0)
    k1, k2, k3, k4, k5 = jax.random.split(key, 5)

    N, C, H, W = 2, 3, 64, 64          # image (NCHW)
    CY, HY, WY = 16, 16, 16            # latent y
    CZ, HZ, WZ = 8, 8, 8               # hyper-latent z (tiny -> XLA path)

    target = jax.random.uniform(k1, (N, C, H, W), jnp.float32)
    x_hat = jax.random.uniform(k2, (N, C, H, W), jnp.float32)
    y_lik = jax.random.uniform(k3, (N, CY, HY, WY), jnp.float32,
                               minval=1e-3, maxval=1.0)
    z_lik = jax.random.uniform(k4, (N, CZ, HZ, WZ), jnp.float32,
                               minval=1e-3, maxval=1.0)
    y_mask = (jax.random.uniform(k5, (N, CY, HY, WY)) > 0.5).astype(jnp.float32)

    output = {
        "likelihoods": {"y": y_lik, "z": z_lik},
        "y_mask": y_mask,
        "x_hat": x_hat,
    }

    out = rate_distortion_loss_proj(output, target, lmbda=0.01)
    out = jax.tree_util.tree_map(jax.block_until_ready, out)

    # ---- pure-JAX reference for the full loss --------------------------------
    ref_bpp = ((jnp.log(y_lik) * y_mask).sum() + jnp.log(z_lik).sum()) / (
        -math.log(2) * N * H * W
    )
    ref_mask_ave = jnp.mean(y_mask)
    ref_entropy = (jnp.log(y_lik) * y_mask).sum() / jnp.sum(y_mask)
    ref_mse = jnp.mean((x_hat - target) ** 2)
    ref_loss = 0.01 * (255.0 ** 2) * ref_mse + ref_bpp

    assert jnp.allclose(out["bpp_loss"], ref_bpp, rtol=1e-5, atol=1e-6)
    assert jnp.allclose(out["mask_ave"], ref_mask_ave, rtol=1e-5, atol=1e-6)
    assert jnp.allclose(out["entropy_y_ave"], ref_entropy, rtol=1e-5, atol=1e-6)
    assert jnp.allclose(out["mse_loss"], ref_mse, rtol=1e-5, atol=1e-6)
    assert jnp.allclose(out["loss"], ref_loss, rtol=1e-5, atol=1e-5)

    # ---- extra coverage of the Pallas code paths ------------------------------
    def check(label, got, want, rtol=1e-5, atol=1e-4):
        got = jax.block_until_ready(got)
        assert jnp.allclose(got, want, rtol=rtol, atol=atol), (label, got, want)

    ky, km, ka, kb = jax.random.split(jax.random.PRNGKey(1), 4)

    # even block count -> 2-way split, exact tiling (no masking at all)
    y2 = jax.random.uniform(ky, (64, 16, 128), jnp.float32, minval=1e-3, maxval=1.0)
    m2 = (jax.random.uniform(km, (64, 16, 128)) > 0.5).astype(jnp.float32)
    ls, ms = jax.jit(partial(masked_log_sums, max_block_rows=16))(y2, m2)
    check("split/logsum", ls, jnp.sum(jnp.log(y2) * m2), rtol=1e-4)
    check("split/masksum", ms, jnp.sum(m2), rtol=1e-5)

    # even block count WITH a partial last block (split + last-block row mask)
    a2 = jax.random.normal(ka, (1, 1016, 128), jnp.float32)
    b2 = jax.random.normal(kb, (1, 1016, 128), jnp.float32)
    sse2 = jax.jit(partial(sum_squared_error, max_block_rows=16))(a2, b2)
    check("tail/sse", sse2, jnp.sum((a2 - b2) ** 2), rtol=1e-4, atol=1e-2)

    # lane-unaligned size (neutral-pad path) + odd block count + Pallas log_sum
    z2 = jax.random.uniform(ky, (12345,), jnp.float32, minval=1e-3, maxval=1.0)
    lz = jax.jit(partial(_log_sum_pallas, max_block_rows=16))(z2)
    check("pad/logsum", lz, jnp.sum(jnp.log(z2)), rtol=1e-4, atol=1e-3)

    print("KERNEL_OK")
</pallas_src>

<mosaic_0001>
module attributes {stable_mosaic.version = 11 : i64} {
  func.func @_masked_logsum_kernel(%arg0: i32, %arg1: i32, %arg2: memref<64x128xf32, #tpu.memory_space<vmem>>, %arg3: memref<64x128xf32, #tpu.memory_space<vmem>>, %arg4: memref<1x1x128xf32, #tpu.memory_space<vmem>>, %arg5: memref<1x1x128xf32, #tpu.memory_space<vmem>>) attributes {dimension_semantics = [#tpu.dimension_semantics<parallel>, #tpu.dimension_semantics<arbitrary>], iteration_bounds = array<i64: 1, 1>, scalar_prefetch = 0 : i64, scratch_operands = 0 : i64, tpu.core_type = #tpu.core_type<tc>, window_params = [{transform_indices = @transform_0, window_bounds = array<i64: 64, 128>}, {transform_indices = @transform_1, window_bounds = array<i64: 64, 128>}, {transform_indices = @transform_2, window_bounds = array<i64: 1, 1, 128>}, {transform_indices = @transform_3, window_bounds = array<i64: 1, 1, 128>}]} {
    %c0_i32 = arith.constant 0 : i32
    %0 = arith.cmpi eq, %arg1, %c0_i32 : i32
    %1 = arith.extui %0 : i1 to i32
    %c0_i32_0 = arith.constant 0 : i32
    %2 = arith.cmpi ne, %1, %c0_i32_0 : i32
    scf.if %2 {
      %cst_17 = arith.constant 0.000000e+00 : f32
      %19 = vector.broadcast %cst_17 : f32 to vector<1x1x128xf32>
      %c0_18 = arith.constant 0 : index
      %c0_19 = arith.constant 0 : index
      %c0_20 = arith.constant 0 : index
      %20 = vector.load %arg4[%c0_18, %c0_19, %c0_20] : memref<1x1x128xf32, #tpu.memory_space<vmem>>, vector<1x1x128xf32>
      tpu.vector_store %arg4[%c0_18, %c0_19, %c0_20], %19 {strides = array<i32>} : memref<1x1x128xf32, #tpu.memory_space<vmem>>, vector<1x1x128xf32>,
      %cst_21 = arith.constant 0.000000e+00 : f32
      %21 = vector.broadcast %cst_21 : f32 to vector<1x1x128xf32>
      %c0_22 = arith.constant 0 : index
      %c0_23 = arith.constant 0 : index
      %c0_24 = arith.constant 0 : index
      %22 = vector.load %arg5[%c0_22, %c0_23, %c0_24] : memref<1x1x128xf32, #tpu.memory_space<vmem>>, vector<1x1x128xf32>
      tpu.vector_store %arg5[%c0_22, %c0_23, %c0_24], %21 {strides = array<i32>} : memref<1x1x128xf32, #tpu.memory_space<vmem>>, vector<1x1x128xf32>,
    } else {
    }
    %c0 = arith.constant 0 : index
    %c0_1 = arith.constant 0 : index
    %3 = vector.load %arg2[%c0, %c0_1] : memref<64x128xf32, #tpu.memory_space<vmem>>, vector<64x128xf32>
    %c0_2 = arith.constant 0 : index
    %c0_3 = arith.constant 0 : index
    %4 = vector.load %arg3[%c0_2, %c0_3] : memref<64x128xf32, #tpu.memory_space<vmem>>, vector<64x128xf32>
    %5 = math.log %3 : vector<64x128xf32>
    %6 = arith.mulf %5, %4 : vector<64x128xf32>
    %c0_4 = arith.constant 0 : index
    %c0_5 = arith.constant 0 : index
    %c0_6 = arith.constant 0 : index
    %7 = vector.load %arg4[%c0_4, %c0_5, %c0_6] : memref<1x1x128xf32, #tpu.memory_space<vmem>>, vector<1x1x128xf32>
    %cst = arith.constant dense<0.000000e+00> : vector<128xf32>
    %8 = vector.multi_reduction <add>, %6, %cst [0] : vector<64x128xf32> to vector<128xf32>
    %9 = vector.shape_cast %8 : vector<128xf32> to vector<1x128xf32>
    %10 = vector.shape_cast %9 : vector<1x128xf32> to vector<1x1x128xf32>
    %11 = arith.addf %7, %10 : vector<1x1x128xf32>
    %c0_7 = arith.constant 0 : index
    %c0_8 = arith.constant 0 : index
    %c0_9 = arith.constant 0 : index
    %12 = vector.load %arg4[%c0_7, %c0_8, %c0_9] : memref<1x1x128xf32, #tpu.memory_space<vmem>>, vector<1x1x128xf32>
    tpu.vector_store %arg4[%c0_7, %c0_8, %c0_9], %11 {strides = array<i32>} : memref<1x1x128xf32, #tpu.memory_space<vmem>>, vector<1x1x128xf32>,
    %c0_10 = arith.constant 0 : index
    %c0_11 = arith.constant 0 : index
    %c0_12 = arith.constant 0 : index
    %13 = vector.load %arg5[%c0_10, %c0_11, %c0_12] : memref<1x1x128xf32, #tpu.memory_space<vmem>>, vector<1x1x128xf32>
    %cst_13 = arith.constant dense<0.000000e+00> : vector<128xf32>
    %14 = vector.multi_reduction <add>, %4, %cst_13 [0] : vector<64x128xf32> to vector<128xf32>
    %15 = vector.shape_cast %14 : vector<128xf32> to vector<1x128xf32>
    %16 = vector.shape_cast %15 : vector<1x128xf32> to vector<1x1x128xf32>
    %17 = arith.addf %13, %16 : vector<1x1x128xf32>
    %c0_14 = arith.constant 0 : index
    %c0_15 = arith.constant 0 : index
    %c0_16 = arith.constant 0 : index
    %18 = vector.load %arg5[%c0_14, %c0_15, %c0_16] : memref<1x1x128xf32, #tpu.memory_space<vmem>>, vector<1x1x128xf32>
    tpu.vector_store %arg5[%c0_14, %c0_15, %c0_16], %17 {strides = array<i32>} : memref<1x1x128xf32, #tpu.memory_space<vmem>>, vector<1x1x128xf32>,
    return
  }
  func.func @transform_0(%arg0: i32, %arg1: i32) -> (i32, i32) {
    %c1_i32 = arith.constant 1 : i32
    %0 = arith.muli %arg0, %c1_i32 : i32
    %1 = arith.addi %0, %arg1 : i32
    %c0_i32 = arith.constant 0 : i32
    %c0_i32_0 = arith.constant 0 : i32
    return %1, %c0_i32 : i32, i32
  }
  func.func @transform_1(%arg0: i32, %arg1: i32) -> (i32, i32) {
    %c1_i32 = arith.constant 1 : i32
    %0 = arith.muli %arg0, %c1_i32 : i32
    %1 = arith.addi %0, %arg1 : i32
    %c0_i32 = arith.constant 0 : i32
    %c0_i32_0 = arith.constant 0 : i32
    return %1, %c0_i32 : i32, i32
  }
  func.func @transform_2(%arg0: i32, %arg1: i32) -> (i32, i32, i32) {
    %c0_i32 = arith.constant 0 : i32
    %c0_i32_0 = arith.constant 0 : i32
    %c0_i32_1 = arith.constant 0 : i32
    return %arg0, %c0_i32, %c0_i32_0 : i32, i32, i32
  }
  func.func @transform_3(%arg0: i32, %arg1: i32) -> (i32, i32, i32) {
    %c0_i32 = arith.constant 0 : i32
    %c0_i32_0 = arith.constant 0 : i32
    %c0_i32_1 = arith.constant 0 : i32
    return %arg0, %c0_i32, %c0_i32_0 : i32, i32, i32
  }
}

module attributes {stable_mosaic.version = 11 : i64} {
  func.func @_sse_kernel(%arg0: i32, %arg1: i32, %arg2: memref<192x128xf32, #tpu.memory_space<vmem>>, %arg3: memref<192x128xf32, #tpu.memory_space<vmem>>, %arg4: memref<1x1x128xf32, #tpu.memory_space<vmem>>) attributes {dimension_semantics = [#tpu.dimension_semantics<parallel>, #tpu.dimension_semantics<arbitrary>], iteration_bounds = array<i64: 1, 1>, scalar_prefetch = 0 : i64, scratch_operands = 0 : i64, tpu.core_type = #tpu.core_type<tc>, window_params = [{transform_indices = @transform_0, window_bounds = array<i64: 192, 128>}, {transform_indices = @transform_1, window_bounds = array<i64: 192, 128>}, {transform_indices = @transform_2, window_bounds = array<i64: 1, 1, 128>}]} {
    %c0_i32 = arith.constant 0 : i32
    %0 = arith.cmpi eq, %arg1, %c0_i32 : i32
    %1 = arith.extui %0 : i1 to i32
    %c0_i32_0 = arith.constant 0 : i32
    %2 = arith.cmpi ne, %1, %c0_i32_0 : i32
    scf.if %2 {
      %cst_10 = arith.constant 0.000000e+00 : f32
      %13 = vector.broadcast %cst_10 : f32 to vector<1x1x128xf32>
      %c0_11 = arith.constant 0 : index
      %c0_12 = arith.constant 0 : index
      %c0_13 = arith.constant 0 : index
      %14 = vector.load %arg4[%c0_11, %c0_12, %c0_13] : memref<1x1x128xf32, #tpu.memory_space<vmem>>, vector<1x1x128xf32>
      tpu.vector_store %arg4[%c0_11, %c0_12, %c0_13], %13 {strides = array<i32>} : memref<1x1x128xf32, #tpu.memory_space<vmem>>, vector<1x1x128xf32>,
    } else {
    }
    %c0 = arith.constant 0 : index
    %c0_1 = arith.constant 0 : index
    %3 = vector.load %arg2[%c0, %c0_1] : memref<192x128xf32, #tpu.memory_space<vmem>>, vector<192x128xf32>
    %c0_2 = arith.constant 0 : index
    %c0_3 = arith.constant 0 : index
    %4 = vector.load %arg3[%c0_2, %c0_3] : memref<192x128xf32, #tpu.memory_space<vmem>>, vector<192x128xf32>
    %5 = arith.subf %3, %4 : vector<192x128xf32>
    %6 = arith.mulf %5, %5 : vector<192x128xf32>
    %c0_4 = arith.constant 0 : index
    %c0_5 = arith.constant 0 : index
    %c0_6 = arith.constant 0 : index
    %7 = vector.load %arg4[%c0_4, %c0_5, %c0_6] : memref<1x1x128xf32, #tpu.memory_space<vmem>>, vector<1x1x128xf32>
    %cst = arith.constant dense<0.000000e+00> : vector<128xf32>
    %8 = vector.multi_reduction <add>, %6, %cst [0] : vector<192x128xf32> to vector<128xf32>
    %9 = vector.shape_cast %8 : vector<128xf32> to vector<1x128xf32>
    %10 = vector.shape_cast %9 : vector<1x128xf32> to vector<1x1x128xf32>
    %11 = arith.addf %7, %10 : vector<1x1x128xf32>
    %c0_7 = arith.constant 0 : index
    %c0_8 = arith.constant 0 : index
    %c0_9 = arith.constant 0 : index
    %12 = vector.load %arg4[%c0_7, %c0_8, %c0_9] : memref<1x1x128xf32, #tpu.memory_space<vmem>>, vector<1x1x128xf32>
    tpu.vector_store %arg4[%c0_7, %c0_8, %c0_9], %11 {strides = array<i32>} : memref<1x1x128xf32, #tpu.memory_space<vmem>>, vector<1x1x128xf32>,
    return
  }
  func.func @transform_0(%arg0: i32, %arg1: i32) -> (i32, i32) {
    %c1_i32 = arith.constant 1 : i32
    %0 = arith.muli %arg0, %c1_i32 : i32
    %1 = arith.addi %0, %arg1 : i32
    %c0_i32 = arith.constant 0 : i32
    %c0_i32_0 = arith.constant 0 : i32
    return %1, %c0_i32 : i32, i32
  }
  func.func @transform_1(%arg0: i32, %arg1: i32) -> (i32, i32) {
    %c1_i32 = arith.constant 1 : i32
    %0 = arith.muli %arg0, %c1_i32 : i32
    %1 = arith.addi %0, %arg1 : i32
    %c0_i32 = arith.constant 0 : i32
    %c0_i32_0 = arith.constant 0 : i32
    return %1, %c0_i32 : i32, i32
  }
  func.func @transform_2(%arg0: i32, %arg1: i32) -> (i32, i32, i32) {
    %c0_i32 = arith.constant 0 : i32
    %c0_i32_0 = arith.constant 0 : i32
    %c0_i32_1 = arith.constant 0 : i32
    return %arg0, %c0_i32, %c0_i32_0 : i32, i32, i32
  }
}

</mosaic_0001>

<llo_original>
// kernel: rate_distortion_loss_proj.2
$region0: #{rate_distortion_loss_proj.2}
  #allocation0 [shape = 'u32[]', space=smem, size = 0x4, offset = 0x4, fixed_abs, tag = 'smem constant byte address 0x4 - core index']
  #allocation1 [shape = 'u32[144,128]{1,0:T(1,128)}', space=vmem, size = 0x12000, scoped, tag = 'internal scratch']
  %s0 = inlined_call_operand.vmem [shape: f32[64,128], index: 0, kind: input, shape index: {}]
  %s1 = inlined_call_operand.vmem [shape: f32[64,128], index: 1, kind: input, shape index: {}]
  %s2 = inlined_call_operand.vmem [shape: f32[1,1,128], index: 2, kind: output, shape index: {0}]
  %s3 = inlined_call_operand.vmem [shape: f32[1,1,128], index: 3, kind: output, shape index: {1}]
  %4 = xla_tuple %s2, %s3
  %s5 = sld [smem:[#allocation0]]
  $region30: #{rate_distortion_loss_proj.2} parent=0
    _
  %s7 = ssub.s32 1, %s5
  %s8 = scalar_select 0, %s7, %s5
  // Predicated region
  $region2: #{rate_distortion_loss_proj.2} parent=0 // pred_check
    _
  $region3: #{rate_distortion_loss_proj.2} parent=0 // pred_check_branch
    %10 = sbr.rel (0) target = $region5
  $region4: #{rate_distortion_loss_proj.2} parent=0 // pred_region
    %s11 = sadd.s32 0, 0
    %s12 = smul.u32 8, %s11
    %p13 = scmp.lt.s32.totalorder %s12, 7
    %s14 = scalar_select %p13, %s12, 7
    %s15 = smul.addr %s14, 8
    %s16 = scalar_lea.vmem %s0, %s15
    %s17 = sadd.s32 0, 0
    %s18 = smul.u32 8, %s17
  $region5: #{rate_distortion_loss_proj.2} parent=0 // pred_fallthru
    _
  // Predicated region
  $region6: #{rate_distortion_loss_proj.2} parent=0 // pred_check
    _
  $region7: #{rate_distortion_loss_proj.2} parent=0 // pred_check_branch
    %20 = sbr.rel (0) target = $region9
  $region8: #{rate_distortion_loss_proj.2} parent=0 // pred_region
    %s21 = sadd.s32 0, 0
    %s22 = smul.u32 8, %s21
    %p23 = scmp.lt.s32.totalorder %s22, 7
    %s24 = scalar_select %p23, %s22, 7
    %s25 = smul.addr %s24, 8
    %s26 = scalar_lea.vmem %s1, %s25
    %s27 = sadd.s32 0, 0
    %s28 = smul.u32 8, %s27
  $region9: #{rate_distortion_loss_proj.2} parent=0 // pred_fallthru
    _
  %s29 = sadd.s32 0, 0
  %s30 = smul.u32 8, %s29
  %p31 = scmp.lt.s32.totalorder %s30, 7
  %s32 = scalar_select %p31, %s30, 7
  %s33 = smul.addr %s32, 8
  %s34 = scalar_lea.vmem %s0, %s33
  %s35 = sadd.s32 0, 0
  %s36 = smul.u32 8, %s35
  %p37 = scmp.lt.s32.totalorder %s36, 7
  %s38 = scalar_select %p37, %s36, 7
  %s39 = smul.addr %s38, 8
  %s40 = scalar_lea.vmem %s1, %s39
  %s41 = sadd.s32 0, 0
  %s42 = smul.u32 8, %s41
  %p43 = scmp.lt.s32.totalorder %s42, 7
  %s44 = scalar_select %p43, %s42, 7
  %s45 = smul.addr %s44, 8
  %s46 = scalar_lea.vmem %s0, %s45
  %s47 = sadd.s32 0, 0
  %s48 = smul.u32 8, %s47
  %s49 = sadd.s32 0, 0
  %s50 = smul.u32 8, %s49
  %p51 = scmp.lt.s32.totalorder %s50, 7
  %s52 = scalar_select %p51, %s50, 7
  %s53 = smul.addr %s52, 8
  %s54 = scalar_lea.vmem %s1, %s53
  %s55 = sadd.s32 0, 0
  %s56 = smul.u32 8, %s55
  %p57 = scmp.eq.s32.totalorder 0, 0
  // Predicated region
  $region10: #{rate_distortion_loss_proj.2} parent=0 // pred_check
    %p58 = pneg %p57
  $region11: #{rate_distortion_loss_proj.2} parent=0 // pred_check_branch
    %60 = sbr.rel (%p58) target = $region13
  $region12: #{rate_distortion_loss_proj.2} parent=0 // pred_region
    %61 = vst [vmem:[%s2] sm:$0x1] 0.0
    %62 = vst [vmem:[%s3] sm:$0x1] 0.0
  $region13: #{rate_distortion_loss_proj.2} parent=0 // pred_fallthru
    _
  %v63 = vld [vmem:[%s46] sm:$0xff]
  %v64 = vld [vmem:[%s46 + $0x8] sm:$0xff]
  %v65 = vld [vmem:[%s46 + $0x10] sm:$0xff]
  %v66 = vld [vmem:[%s46 + $0x18] sm:$0xff]
  %v67 = vld [vmem:[%s46 + $0x20] sm:$0xff]
  %v68 = vld [vmem:[%s46 + $0x28] sm:$0xff]
  %v69 = vld [vmem:[%s46 + $0x30] sm:$0xff]
  %v70 = vld [vmem:[%s46 + $0x38] sm:$0xff]
  %v71 = vld [vmem:[%s54] sm:$0xff]
  %v72 = vld [vmem:[%s54 + $0x8] sm:$0xff]
  %v73 = vld [vmem:[%s54 + $0x10] sm:$0xff]
  %v74 = vld [vmem:[%s54 + $0x18] sm:$0xff]
  %v75 = vld [vmem:[%s54 + $0x20] sm:$0xff]
  %v76 = vld [vmem:[%s54 + $0x28] sm:$0xff]
  %v77 = vld [vmem:[%s54 + $0x30] sm:$0xff]
  %v78 = vld [vmem:[%s54 + $0x38] sm:$0xff]
  %v79 = vlog2.pop %v63
  %v80 = vmul.f32 %v79, 0.6931472
  %v81 = vlog2.pop %v64
  %v82 = vmul.f32 %v81, 0.6931472
  %v83 = vlog2.pop %v65
  %v84 = vmul.f32 %v83, 0.6931472
  %v85 = vlog2.pop %v66
  %v86 = vmul.f32 %v85, 0.6931472
  %v87 = vlog2.pop %v67
  %v88 = vmul.f32 %v87, 0.6931472
  %v89 = vlog2.pop %v68
  %v90 = vmul.f32 %v89, 0.6931472
  %v91 = vlog2.pop %v69
  %v92 = vmul.f32 %v91, 0.6931472
  %v93 = vlog2.pop %v70
  %v94 = vmul.f32 %v93, 0.6931472
  %v95 = vmul.f32 %v80, %v71
  %v96 = vmul.f32 %v82, %v72
  %v97 = vmul.f32 %v84, %v73
  %v98 = vmul.f32 %v86, %v74
  %v99 = vmul.f32 %v88, %v75
  %v100 = vmul.f32 %v90, %v76
  %v101 = vmul.f32 %v92, %v77
  %v102 = vmul.f32 %v94, %v78
  %v103 = vld [vmem:[%s2] sm:$0x1]
  %v104 = vadd.f32 %v95, %v96
  %v105 = vadd.f32 %v104, %v97
  %v106 = vadd.f32 %v105, %v98
  %v107 = vadd.f32 %v106, %v99
  %v108 = vadd.f32 %v107, %v100
  %v109 = vadd.f32 %v108, %v101
  %v110 = vadd.f32 %v109, %v102
  %v111 = vrot.slane %v110, 4
  %v112 = vadd.f32 %v110, %v111
  %v113 = vrot.slane %v112, 2
  %v114 = vadd.f32 %v112, %v113
  %v115 = vrot.slane %v114, 1
  %v116 = vadd.f32 %v114, %v115
  %v117 = vadd.f32 %v103, %v116
  %118 = vst [vmem:[%s2] sm:$0x1] %v117
  %v119 = vld [vmem:[%s3] sm:$0x1]
  %v120 = vadd.f32 %v71, %v72
  %v121 = vadd.f32 %v120, %v73
  %v122 = vadd.f32 %v121, %v74
  %v123 = vadd.f32 %v122, %v75
  %v124 = vadd.f32 %v123, %v76
  %v125 = vadd.f32 %v124, %v77
  %v126 = vadd.f32 %v125, %v78
  %v127 = vrot.slane %v126, 4
  %v128 = vadd.f32 %v126, %v127
  %v129 = vrot.slane %v128, 2
  %v130 = vadd.f32 %v128, %v129
  %v131 = vrot.slane %v130, 1
  %v132 = vadd.f32 %v130, %v131
  %v133 = vadd.f32 %v119, %v132
  %134 = vst [vmem:[%s3] sm:$0x1] %v133
  // Predicated region
  $region14: #{rate_distortion_loss_proj.2} parent=0 // pred_check
    _
  $region15: #{rate_distortion_loss_proj.2} parent=0 // pred_check_branch
    %136 = sbr.rel (0) target = $region17
  $region16: #{rate_distortion_loss_proj.2} parent=0 // pred_region
    _
  $region17: #{rate_distortion_loss_proj.2} parent=0 // pred_fallthru
    _
  // Predicated region
  $region18: #{rate_distortion_loss_proj.2} parent=0 // pred_check
    _
  $region19: #{rate_distortion_loss_proj.2} parent=0 // pred_check_branch
    %138 = sbr.rel (0) target = $region21
  $region20: #{rate_distortion_loss_proj.2} parent=0 // pred_region
    _
  $region21: #{rate_distortion_loss_proj.2} parent=0 // pred_fallthru
    _
  // Predicated region
  $region22: #{rate_distortion_loss_proj.2} parent=0 // pred_check
    _
  $region23: #{rate_distortion_loss_proj.2} parent=0 // pred_check_branch
    %140 = sbr.rel (0) target = $region25
  $region24: #{rate_distortion_loss_proj.2} parent=0 // pred_region
    _
  $region25: #{rate_distortion_loss_proj.2} parent=0 // pred_fallthru
    _
  // Predicated region
  $region26: #{rate_distortion_loss_proj.2} parent=0 // pred_check
    _
  $region27: #{rate_distortion_loss_proj.2} parent=0 // pred_check_branch
    %142 = sbr.rel (0) target = $region29
  $region28: #{rate_distortion_loss_proj.2} parent=0 // pred_region
    _
  $region29: #{rate_distortion_loss_proj.2} parent=0 // pred_fallthru
    _

// kernel: rate_distortion_loss_proj.3
$region0: #{rate_distortion_loss_proj.3}
  #allocation0 [shape = 'u32[]', space=smem, size = 0x4, offset = 0x4, fixed_abs, tag = 'smem constant byte address 0x4 - core index']
  #allocation1 [shape = 'u32[144,128]{1,0:T(1,128)}', space=vmem, size = 0x12000, scoped, tag = 'internal scratch']
  %s0 = inlined_call_operand.vmem [shape: f32[192,128], index: 0, kind: input, shape index: {}]
  %s1 = inlined_call_operand.vmem [shape: f32[192,128], index: 1, kind: input, shape index: {}]
  %s2 = inlined_call_operand.vmem [shape: f32[1,1,128], index: 2, kind: output, shape index: {}]
  %s3 = sld [smem:[#allocation0]]
  $region22: #{rate_distortion_loss_proj.3} parent=0
    _
  %s5 = ssub.s32 1, %s3
  %s6 = scalar_select 0, %s5, %s3
  // Predicated region
  $region2: #{rate_distortion_loss_proj.3} parent=0 // pred_check
    _
  $region3: #{rate_distortion_loss_proj.3} parent=0 // pred_check_branch
    %8 = sbr.rel (0) target = $region5
  $region4: #{rate_distortion_loss_proj.3} parent=0 // pred_region
    %s9 = sadd.s32 0, 0
    %s10 = smul.u32 24, %s9
    %p11 = scmp.lt.s32.totalorder %s10, 23
    %s12 = scalar_select %p11, %s10, 23
    %s13 = smul.addr %s12, 8
    %s14 = scalar_lea.vmem %s0, %s13
    %s15 = sadd.s32 0, 0
    %s16 = smul.u32 24, %s15
  $region5: #{rate_distortion_loss_proj.3} parent=0 // pred_fallthru
    _
  // Predicated region
  $region6: #{rate_distortion_loss_proj.3} parent=0 // pred_check
    _
  $region7: #{rate_distortion_loss_proj.3} parent=0 // pred_check_branch
    %18 = sbr.rel (0) target = $region9
  $region8: #{rate_distortion_loss_proj.3} parent=0 // pred_region
    %s19 = sadd.s32 0, 0
    %s20 = smul.u32 24, %s19
    %p21 = scmp.lt.s32.totalorder %s20, 23
    %s22 = scalar_select %p21, %s20, 23
    %s23 = smul.addr %s22, 8
    %s24 = scalar_lea.vmem %s1, %s23
    %s25 = sadd.s32 0, 0
    %s26 = smul.u32 24, %s25
  $region9: #{rate_distortion_loss_proj.3} parent=0 // pred_fallthru
    _
  %s27 = sadd.s32 0, 0
  %s28 = smul.u32 24, %s27
  %p29 = scmp.lt.s32.totalorder %s28, 23
  %s30 = scalar_select %p29, %s28, 23
  %s31 = smul.addr %s30, 8
  %s32 = scalar_lea.vmem %s0, %s31
  %s33 = sadd.s32 0, 0
  %s34 = smul.u32 24, %s33
  %p35 = scmp.lt.s32.totalorder %s34, 23
  %s36 = scalar_select %p35, %s34, 23
  %s37 = smul.addr %s36, 8
  %s38 = scalar_lea.vmem %s1, %s37
  %s39 = sadd.s32 0, 0
  %s40 = smul.u32 24, %s39
  %p41 = scmp.lt.s32.totalorder %s40, 23
  %s42 = scalar_select %p41, %s40, 23
  %s43 = smul.addr %s42, 8
  %s44 = scalar_lea.vmem %s0, %s43
  %s45 = sadd.s32 0, 0
  %s46 = smul.u32 24, %s45
  %s47 = sadd.s32 0, 0
  %s48 = smul.u32 24, %s47
  %p49 = scmp.lt.s32.totalorder %s48, 23
  %s50 = scalar_select %p49, %s48, 23
  %s51 = smul.addr %s50, 8
  %s52 = scalar_lea.vmem %s1, %s51
  %s53 = sadd.s32 0, 0
  %s54 = smul.u32 24, %s53
  %p55 = scmp.eq.s32.totalorder 0, 0
  // Predicated region
  $region10: #{rate_distortion_loss_proj.3} parent=0 // pred_check
    %p56 = pneg %p55
  $region11: #{rate_distortion_loss_proj.3} parent=0 // pred_check_branch
    %58 = sbr.rel (%p56) target = $region13
  $region12: #{rate_distortion_loss_proj.3} parent=0 // pred_region
    %59 = vst [vmem:[%s2] sm:$0x1] 0.0
  $region13: #{rate_distortion_loss_proj.3} parent=0 // pred_fallthru
    _
  %v60 = vld [vmem:[%s44] sm:$0xff]
  %v61 = vld [vmem:[%s44 + $0x8] sm:$0xff]
  %v62 = vld [vmem:[%s44 + $0x10] sm:$0xff]
  %v63 = vld [vmem:[%s44 + $0x18] sm:$0xff]
  %v64 = vld [vmem:[%s44 + $0x20] sm:$0xff]
  %v65 = vld [vmem:[%s44 + $0x28] sm:$0xff]
  %v66 = vld [vmem:[%s44 + $0x30] sm:$0xff]
  %v67 = vld [vmem:[%s44 + $0x38] sm:$0xff]
  %v68 = vld [vmem:[%s44 + $0x40] sm:$0xff]
  %v69 = vld [vmem:[%s44 + $0x48] sm:$0xff]
  %v70 = vld [vmem:[%s44 + $0x50] sm:$0xff]
  %v71 = vld [vmem:[%s44 + $0x58] sm:$0xff]
  %v72 = vld [vmem:[%s44 + $0x60] sm:$0xff]
  %v73 = vld [vmem:[%s44 + $0x68] sm:$0xff]
  %v74 = vld [vmem:[%s44 + $0x70] sm:$0xff]
  %v75 = vld [vmem:[%s44 + $0x78] sm:$0xff]
  %v76 = vld [vmem:[%s44 + $0x80] sm:$0xff]
  %v77 = vld [vmem:[%s44 + $0x88] sm:$0xff]
  %v78 = vld [vmem:[%s44 + $0x90] sm:$0xff]
  %v79 = vld [vmem:[%s44 + $0x98] sm:$0xff]
  %v80 = vld [vmem:[%s44 + $0xa0] sm:$0xff]
  %v81 = vld [vmem:[%s44 + $0xa8] sm:$0xff]
  %v82 = vld [vmem:[%s44 + $0xb0] sm:$0xff]
  %v83 = vld [vmem:[%s44 + $0xb8] sm:$0xff]
  %v84 = vld [vmem:[%s52] sm:$0xff]
  %v85 = vld [vmem:[%s52 + $0x8] sm:$0xff]
  %v86 = vld [vmem:[%s52 + $0x10] sm:$0xff]
  %v87 = vld [vmem:[%s52 + $0x18] sm:$0xff]
  %v88 = vld [vmem:[%s52 + $0x20] sm:$0xff]
  %v89 = vld [vmem:[%s52 + $0x28] sm:$0xff]
  %v90 = vld [vmem:[%s52 + $0x30] sm:$0xff]
  %v91 = vld [vmem:[%s52 + $0x38] sm:$0xff]
  %v92 = vld [vmem:[%s52 + $0x40] sm:$0xff]
  %v93 = vld [vmem:[%s52 + $0x48] sm:$0xff]
  %v94 = vld [vmem:[%s52 + $0x50] sm:$0xff]
  %v95 = vld [vmem:[%s52 + $0x58] sm:$0xff]
  %v96 = vld [vmem:[%s52 + $0x60] sm:$0xff]
  %v97 = vld [vmem:[%s52 + $0x68] sm:$0xff]
  %v98 = vld [vmem:[%s52 + $0x70] sm:$0xff]
  %v99 = vld [vmem:[%s52 + $0x78] sm:$0xff]
  %v100 = vld [vmem:[%s52 + $0x80] sm:$0xff]
  %v101 = vld [vmem:[%s52 + $0x88] sm:$0xff]
  %v102 = vld [vmem:[%s52 + $0x90] sm:$0xff]
  %v103 = vld [vmem:[%s52 + $0x98] sm:$0xff]
  %v104 = vld [vmem:[%s52 + $0xa0] sm:$0xff]
  %v105 = vld [vmem:[%s52 + $0xa8] sm:$0xff]
  %v106 = vld [vmem:[%s52 + $0xb0] sm:$0xff]
  %v107 = vld [vmem:[%s52 + $0xb8] sm:$0xff]
  %v108 = vsub.f32 %v60, %v84
  %v109 = vsub.f32 %v61, %v85
  %v110 = vsub.f32 %v62, %v86
  %v111 = vsub.f32 %v63, %v87
  %v112 = vsub.f32 %v64, %v88
  %v113 = vsub.f32 %v65, %v89
  %v114 = vsub.f32 %v66, %v90
  %v115 = vsub.f32 %v67, %v91
  %v116 = vsub.f32 %v68, %v92
  %v117 = vsub.f32 %v69, %v93
  %v118 = vsub.f32 %v70, %v94
  %v119 = vsub.f32 %v71, %v95
  %v120 = vsub.f32 %v72, %v96
  %v121 = vsub.f32 %v73, %v97
  %v122 = vsub.f32 %v74, %v98
  %v123 = vsub.f32 %v75, %v99
  %v124 = vsub.f32 %v76, %v100
  %v125 = vsub.f32 %v77, %v101
  %v126 = vsub.f32 %v78, %v102
  %v127 = vsub.f32 %v79, %v103
  %v128 = vsub.f32 %v80, %v104
  %v129 = vsub.f32 %v81, %v105
  %v130 = vsub.f32 %v82, %v106
  %v131 = vsub.f32 %v83, %v107
  %v132 = vmul.f32 %v108, %v108
  %v133 = vmul.f32 %v109, %v109
  %v134 = vmul.f32 %v110, %v110
  %v135 = vmul.f32 %v111, %v111
  %v136 = vmul.f32 %v112, %v112
  %v137 = vmul.f32 %v113, %v113
  %v138 = vmul.f32 %v114, %v114
  %v139 = vmul.f32 %v115, %v115
  %v140 = vmul.f32 %v116, %v116
  %v141 = vmul.f32 %v117, %v117
  %v142 = vmul.f32 %v118, %v118
  %v143 = vmul.f32 %v119, %v119
  %v144 = vmul.f32 %v120, %v120
  %v145 = vmul.f32 %v121, %v121
  %v146 = vmul.f32 %v122, %v122
  %v147 = vmul.f32 %v123, %v123
  %v148 = vmul.f32 %v124, %v124
  %v149 = vmul.f32 %v125, %v125
  %v150 = vmul.f32 %v126, %v126
  %v151 = vmul.f32 %v127, %v127
  %v152 = vmul.f32 %v128, %v128
  %v153 = vmul.f32 %v129, %v129
  %v154 = vmul.f32 %v130, %v130
  %v155 = vmul.f32 %v131, %v131
  %v156 = vld [vmem:[%s2] sm:$0x1]
  %v157 = vadd.f32 %v132, %v133
  %v158 = vadd.f32 %v157, %v134
  %v159 = vadd.f32 %v158, %v135
  %v160 = vadd.f32 %v159, %v136
  %v161 = vadd.f32 %v160, %v137
  %v162 = vadd.f32 %v161, %v138
  %v163 = vadd.f32 %v162, %v139
  %v164 = vadd.f32 %v163, %v140
  %v165 = vadd.f32 %v164, %v141
  %v166 = vadd.f32 %v165, %v142
  %v167 = vadd.f32 %v166, %v143
  %v168 = vadd.f32 %v167, %v144
  %v169 = vadd.f32 %v168, %v145
  %v170 = vadd.f32 %v169, %v146
  %v171 = vadd.f32 %v170, %v147
  %v172 = vadd.f32 %v171, %v148
  %v173 = vadd.f32 %v172, %v149
  %v174 = vadd.f32 %v173, %v150
  %v175 = vadd.f32 %v174, %v151
  %v176 = vadd.f32 %v175, %v152
  %v177 = vadd.f32 %v176, %v153
  %v178 = vadd.f32 %v177, %v154
  %v179 = vadd.f32 %v178, %v155
  %v180 = vrot.slane %v179, 4
  %v181 = vadd.f32 %v179, %v180
  %v182 = vrot.slane %v181, 2
  %v183 = vadd.f32 %v181, %v182
  %v184 = vrot.slane %v183, 1
  %v185 = vadd.f32 %v183, %v184
  %v186 = vadd.f32 %v156, %v185
  %187 = vst [vmem:[%s2] sm:$0x1] %v186
  // Predicated region
  $region14: #{rate_distortion_loss_proj.3} parent=0 // pred_check
    _
  $region15: #{rate_distortion_loss_proj.3} parent=0 // pred_check_branch
    %189 = sbr.rel (0) target = $region17
  $region16: #{rate_distortion_loss_proj.3} parent=0 // pred_region
    _
  $region17: #{rate_distortion_loss_proj.3} parent=0 // pred_fallthru
    _
  // Predicated region
  $region18: #{rate_distortion_loss_proj.3} parent=0 // pred_check
    _
  $region19: #{rate_distortion_loss_proj.3} parent=0 // pred_check_branch
    %191 = sbr.rel (0) target = $region21
  $region20: #{rate_distortion_loss_proj.3} parent=0 // pred_region
    _
  $region21: #{rate_distortion_loss_proj.3} parent=0 // pred_fallthru
    _

</llo_original>
